<compile_context>
chip_gen: v7x
topology: tpu7x:2x2x1
jax: 0.10.0
libtpu: 0.0.40
codegen_flags: <defaults>
</compile_context>

<pallas_src>
import collections
import functools

import jax
import jax.numpy as jnp
from jax.experimental import pallas as pl
from jax.experimental.pallas import tpu as pltpu

ANs = collections.namedtuple("ANs", ["position", "neighbours"])


def _criterion_kernel(x_ref, meta_ref, o_ref, m_sc, d_sc, s_sc, *,
                      num_rows, num_classes, mask_rows, mask_lanes):
    i = pl.program_id(0)          # row-tile index (parallel)
    j = pl.program_id(1)          # class-chunk index (arbitrary / reduction)
    t, tc = x_ref.shape

    @pl.when(j == 0)
    def _init():
        m_sc[...] = jnp.full_like(m_sc, -jnp.inf)
        d_sc[...] = jnp.zeros_like(d_sc)
        s_sc[...] = jnp.zeros_like(s_sc)

    x = x_ref[...].astype(jnp.float32)                        # cast in-kernel (bf16 OK)

    # Global class id of every lane in this chunk.
    cls = j * tc + jax.lax.broadcasted_iota(jnp.int32, (t, tc), 1)
    if mask_lanes:
        # Ragged last class chunk: garbage lanes -> -inf so exp() = 0 and they
        # never win the running max.
        x = jnp.where(cls < num_classes, x, -jnp.inf)

    # Selection counts: one-hot(label) + sum_k one-hot(neighbour_k), accumulated
    # in int32 (duplicate ids add -> matches torch.gather(...).sum(1)).
    # Instance rows carry neighbour id -1 which never matches a lane.
    meta = meta_ref[...]                                      # (T, K+1) int32
    cnt = (cls == meta[:, 0:1]).astype(jnp.int32)
    for kk in range(1, meta.shape[1]):                        # K is small & static
        cnt = cnt + (cls == meta[:, kk:kk + 1])

    # Online (flash-style) softmax pieces; preds are never materialized.
    chunk_max = jnp.max(x, axis=1, keepdims=True)             # (T,1)  XLU
    m_new = jnp.maximum(m_sc[...], chunk_max)
    alpha = jnp.exp(m_sc[...] - m_new)                        # (T,1)  EUP
    e = jnp.exp(x - m_new)                                    # (T,TC) EUP
    d_sc[...] = alpha * d_sc[...] + jnp.sum(e, axis=1, keepdims=True)
    s_sc[...] = alpha * s_sc[...] + jnp.sum(e * cnt.astype(jnp.float32),
                                            axis=1, keepdims=True)
    m_sc[...] = m_new

    @pl.when(j == pl.num_programs(1) - 1)
    def _finalize():
        # -log(sel / denom) per row, padded / garbage rows removed by select
        # (select, not multiply, so NaN/inf in dead rows cannot leak).
        contrib = jnp.log(d_sc[...]) - jnp.log(s_sc[...])     # (T,1)
        if mask_rows:
            row = i * t + jax.lax.broadcasted_iota(jnp.int32, (t, 1), 0)
            contrib = jnp.where(row < num_rows, contrib, 0.0)
        partial = jnp.sum(contrib)
        # Per-row-tile partial sum -> element [0,0] of this tile's (8,128) block.
        rr = jax.lax.broadcasted_iota(jnp.int32, (8, 128), 0)
        cc = jax.lax.broadcasted_iota(jnp.int32, (8, 128), 1)
        o_ref[...] = jnp.where((rr == 0) & (cc == 0), partial, 0.0)


def criterion(x, y, ans, *, tile_rows=None, lane_cap=2048,
              vmem_block_bytes=2 * 1024 * 1024):
    """AND criterion loss.  x: (B, C) logits, y: (B,) int labels, ans: ANs tables."""
    position = jnp.asarray(ans.position)
    neighbours = jnp.asarray(ans.neighbours)
    b, c = x.shape
    na, k = neighbours.shape

    # Tiny per-row index plumbing (the index_select calls of the PyTorch code).
    y = y.astype(jnp.int32).reshape(b)
    pos_y = jnp.take(position.astype(jnp.int32), y, axis=0)              # (B,)
    is_anchor = pos_y >= 0
    safe_pos = jnp.clip(pos_y, 0, max(na - 1, 0))
    nbr = jnp.take(neighbours.astype(jnp.int32), safe_pos, axis=0)       # (B, K)
    nbr = jnp.where(is_anchor[:, None], nbr, -1)                         # fold anchor flag
    meta = jnp.concatenate([y[:, None], nbr], axis=1).astype(jnp.int32)  # (B, K+1)

    # ---- tiling ------------------------------------------------------------
    # Class axis: full C per block if it fits, else lane-multiple chunks with
    # online softmax across the (arbitrary) class grid axis.
    if c <= lane_cap:
        tile_c = c
    else:
        tile_c = max(128, (lane_cap // 128) * 128)
    num_ct = (c + tile_c - 1) // tile_c

    itemsize = jnp.dtype(x.dtype).itemsize
    sub = {4: 8, 2: 16, 1: 32}.get(itemsize, 8)               # sublane packing
    if tile_rows is None:
        rows = max(sub, (vmem_block_bytes // (tile_c * 4)) // sub * sub)
        rows = min(rows, 2048)
        tile_rows = min(rows, ((b + sub - 1) // sub) * sub)
    tile_rows = max(sub, ((tile_rows + sub - 1) // sub) * sub)
    num_rt = (b + tile_rows - 1) // tile_rows

    kernel = functools.partial(
        _criterion_kernel,
        num_rows=b, num_classes=c,
        mask_rows=(b % tile_rows != 0),
        mask_lanes=(c % tile_c != 0),
    )

    out = pl.pallas_call(
        kernel,
        out_shape=jax.ShapeDtypeStruct((num_rt * 8, 128), jnp.float32),
        grid_spec=pltpu.PrefetchScalarGridSpec(
            num_scalar_prefetch=0,
            grid=(num_rt, num_ct),
            in_specs=[
                pl.BlockSpec((tile_rows, tile_c), lambda i, j: (i, j)),   # logits
                pl.BlockSpec((tile_rows, k + 1), lambda i, j: (i, 0)),    # [label, nbrs]
            ],
            out_specs=pl.BlockSpec((8, 128), lambda i, j: (i, 0)),        # per-tile partial
            scratch_shapes=[
                pltpu.VMEM((tile_rows, 1), jnp.float32),   # running max
                pltpu.VMEM((tile_rows, 1), jnp.float32),   # running denominator
                pltpu.VMEM((tile_rows, 1), jnp.float32),   # running selected sum
            ],
        ),
        compiler_params=pltpu.CompilerParams(
            dimension_semantics=("parallel", "arbitrary"),   # rows parallel (2 TCs on v7x)
            vmem_limit_bytes=32 * 1024 * 1024,               # safe on v5e/v6e/v7x
        ),
        cost_estimate=pl.CostEstimate(
            flops=6 * b * c,
            transcendentals=b * c,
            bytes_accessed=b * c * itemsize + b * (k + 1) * 4 + num_rt * 8 * 128 * 4,
        ),
    )(x, meta)

    # Tiny final reduction of the per-tile partial sums (everything else is 0).
    return jnp.sum(out) * (1.0 / b)


if __name__ == "__main__":
    key = jax.random.PRNGKey(0)

    def make_case(case_key, b, c, k, dtype):
        kx, ky, kn = jax.random.split(case_key, 3)
        x = jax.random.normal(kx, (b, c), dtype=jnp.float32).astype(dtype)
        y = jax.random.randint(ky, (b,), 0, c, dtype=jnp.int32)
        cls_ids = jnp.arange(c, dtype=jnp.int32)
        # Even classes are anchors pointing into the neighbour table, odd are instances.
        position = jnp.where(cls_ids % 2 == 0, cls_ids // 2, -1).astype(jnp.int32)
        na = c // 2
        neighbours = jax.random.randint(kn, (na, k), 0, c, dtype=jnp.int32)
        return x, y, ANs(position=position, neighbours=neighbours)

    def reference(x, y, ans):
        b, _ = x.shape
        na = ans.neighbours.shape[0]
        preds = jax.nn.softmax(x.astype(jnp.float32), axis=1)
        pos_y = ans.position[y]
        p_label = preds[jnp.arange(b), y]
        nbr_rows = ans.neighbours[jnp.clip(pos_y, 0, na - 1)]
        p_nbr = jnp.sum(jnp.take_along_axis(preds, nbr_rows, axis=1), axis=1)
        p = p_label + jnp.where(pos_y >= 0, p_nbr, 0.0)
        return jnp.sum(-jnp.log(p)) / b

    k1, k2 = jax.random.split(key)

    # Case 1: f32, ragged row tiles AND ragged class chunks -> exercises the
    # online-softmax / masking paths (grid (3, 3)).
    x1, y1, ans1 = make_case(k1, 20, 320, 4, jnp.float32)
    loss1 = jax.block_until_ready(criterion(x1, y1, ans1, tile_rows=8, lane_cap=128))
    ref1 = reference(x1, y1, ans1)
    assert jnp.allclose(loss1, ref1, atol=1e-5, rtol=1e-4), (loss1, ref1)

    # Case 2: bf16 logits, default tiling, single class chunk.
    x2, y2, ans2 = make_case(k2, 32, 96, 4, jnp.bfloat16)
    loss2 = jax.block_until_ready(criterion(x2, y2, ans2))
    ref2 = reference(x2, y2, ans2)
    assert jnp.allclose(loss2, ref2, atol=1e-4, rtol=1e-3), (loss2, ref2)

    print("KERNEL_OK")
</pallas_src>

<mosaic_0001>
module attributes {stable_mosaic.version = 11 : i64} {
  func.func @_criterion_kernel(%arg0: i32, %arg1: i32, %arg2: memref<8x128xf32, #tpu.memory_space<vmem>>, %arg3: memref<8x5xi32, #tpu.memory_space<vmem>>, %arg4: memref<8x128xf32, #tpu.memory_space<vmem>>, %arg5: memref<8x1xf32, #tpu.memory_space<vmem>>, %arg6: memref<8x1xf32, #tpu.memory_space<vmem>>, %arg7: memref<8x1xf32, #tpu.memory_space<vmem>>) attributes {dimension_semantics = [#tpu.dimension_semantics<parallel>, #tpu.dimension_semantics<arbitrary>], iteration_bounds = array<i64: 3, 3>, scalar_prefetch = 0 : i64, scratch_operands = 3 : i64, tpu.core_type = #tpu.core_type<tc>, window_params = [{transform_indices = @transform_0, window_bounds = array<i64: 8, 128>}, {transform_indices = @transform_1, window_bounds = array<i64: 8, 5>}, {transform_indices = @transform_2, window_bounds = array<i64: 8, 128>}]} {
    %c0_i32 = arith.constant 0 : i32
    %0 = arith.cmpi eq, %arg1, %c0_i32 : i32
    %1 = arith.extui %0 : i1 to i32
    %c0_i32_0 = arith.constant 0 : i32
    %2 = arith.cmpi ne, %1, %c0_i32_0 : i32
    scf.if %2 {
      %cst_22 = arith.constant 0xFF800000 : f32
      %65 = vector.broadcast %cst_22 : f32 to vector<8x1xf32>
      %c0_23 = arith.constant 0 : index
      %c0_24 = arith.constant 0 : index
      %66 = vector.load %arg5[%c0_23, %c0_24] : memref<8x1xf32, #tpu.memory_space<vmem>>, vector<8x1xf32>
      tpu.vector_store %arg5[%c0_23, %c0_24], %65 {strides = array<i32>} : memref<8x1xf32, #tpu.memory_space<vmem>>, vector<8x1xf32>,
      %cst_25 = arith.constant 0.000000e+00 : f32
      %67 = vector.broadcast %cst_25 : f32 to vector<8x1xf32>
      %c0_26 = arith.constant 0 : index
      %c0_27 = arith.constant 0 : index
      %68 = vector.load %arg6[%c0_26, %c0_27] : memref<8x1xf32, #tpu.memory_space<vmem>>, vector<8x1xf32>
      tpu.vector_store %arg6[%c0_26, %c0_27], %67 {strides = array<i32>} : memref<8x1xf32, #tpu.memory_space<vmem>>, vector<8x1xf32>,
      %cst_28 = arith.constant 0.000000e+00 : f32
      %69 = vector.broadcast %cst_28 : f32 to vector<8x1xf32>
      %c0_29 = arith.constant 0 : index
      %c0_30 = arith.constant 0 : index
      %70 = vector.load %arg7[%c0_29, %c0_30] : memref<8x1xf32, #tpu.memory_space<vmem>>, vector<8x1xf32>
      tpu.vector_store %arg7[%c0_29, %c0_30], %69 {strides = array<i32>} : memref<8x1xf32, #tpu.memory_space<vmem>>, vector<8x1xf32>,
    } else {
    }
    %c0 = arith.constant 0 : index
    %c0_1 = arith.constant 0 : index
    %3 = vector.load %arg2[%c0, %c0_1] : memref<8x128xf32, #tpu.memory_space<vmem>>, vector<8x128xf32>
    %c128_i32 = arith.constant 128 : i32
    %4 = arith.muli %arg1, %c128_i32 : i32
    %5 = tpu.iota {dimensions = array<i32: 1>} : vector<8x128xi32>
    %6 = vector.broadcast %4 : i32 to vector<8x128xi32>
    %7 = arith.addi %6, %5 : vector<8x128xi32>
    %c320_i32 = arith.constant 320 : i32
    %8 = vector.broadcast %c320_i32 : i32 to vector<8x128xi32>
    %9 = arith.cmpi slt, %7, %8 : vector<8x128xi32>
    %cst = arith.constant 0xFF800000 : f32
    %10 = vector.broadcast %cst : f32 to vector<8x128xf32>
    %11 = arith.select %9, %3, %10 : vector<8x128xi1>, vector<8x128xf32>
    %c0_2 = arith.constant 0 : index
    %c0_3 = arith.constant 0 : index
    %12 = vector.load %arg3[%c0_2, %c0_3] : memref<8x5xi32, #tpu.memory_space<vmem>>, vector<8x5xi32>
    %13 = vector.extract_strided_slice %12 {offsets = [0, 0], sizes = [8, 1], strides = [1, 1]} : vector<8x5xi32> to vector<8x1xi32>
    %14 = vector.broadcast %13 : vector<8x1xi32> to vector<8x128xi32>
    %15 = arith.cmpi eq, %7, %14 : vector<8x128xi32>
    %16 = arith.extui %15 : vector<8x128xi1> to vector<8x128xi32>
    %17 = vector.extract_strided_slice %12 {offsets = [0, 1], sizes = [8, 1], strides = [1, 1]} : vector<8x5xi32> to vector<8x1xi32>
    %18 = vector.broadcast %17 : vector<8x1xi32> to vector<8x128xi32>
    %19 = arith.cmpi eq, %7, %18 : vector<8x128xi32>
    %20 = arith.extui %19 : vector<8x128xi1> to vector<8x128xi32>
    %21 = arith.addi %16, %20 : vector<8x128xi32>
    %22 = vector.extract_strided_slice %12 {offsets = [0, 2], sizes = [8, 1], strides = [1, 1]} : vector<8x5xi32> to vector<8x1xi32>
    %23 = vector.broadcast %22 : vector<8x1xi32> to vector<8x128xi32>
    %24 = arith.cmpi eq, %7, %23 : vector<8x128xi32>
    %25 = arith.extui %24 : vector<8x128xi1> to vector<8x128xi32>
    %26 = arith.addi %21, %25 : vector<8x128xi32>
    %27 = vector.extract_strided_slice %12 {offsets = [0, 3], sizes = [8, 1], strides = [1, 1]} : vector<8x5xi32> to vector<8x1xi32>
    %28 = vector.broadcast %27 : vector<8x1xi32> to vector<8x128xi32>
    %29 = arith.cmpi eq, %7, %28 : vector<8x128xi32>
    %30 = arith.extui %29 : vector<8x128xi1> to vector<8x128xi32>
    %31 = arith.addi %26, %30 : vector<8x128xi32>
    %32 = vector.extract_strided_slice %12 {offsets = [0, 4], sizes = [8, 1], strides = [1, 1]} : vector<8x5xi32> to vector<8x1xi32>
    %33 = vector.broadcast %32 : vector<8x1xi32> to vector<8x128xi32>
    %34 = arith.cmpi eq, %7, %33 : vector<8x128xi32>
    %35 = arith.extui %34 : vector<8x128xi1> to vector<8x128xi32>
    %36 = arith.addi %31, %35 : vector<8x128xi32>
    %cst_4 = arith.constant dense<0xFF800000> : vector<8xf32>
    %37 = vector.multi_reduction <maximumf>, %11, %cst_4 [1] : vector<8x128xf32> to vector<8xf32>
    %38 = vector.shape_cast %37 : vector<8xf32> to vector<8x1xf32>
    %c0_5 = arith.constant 0 : index
    %c0_6 = arith.constant 0 : index
    %39 = vector.load %arg5[%c0_5, %c0_6] : memref<8x1xf32, #tpu.memory_space<vmem>>, vector<8x1xf32>
    %40 = arith.maximumf %39, %38 : vector<8x1xf32>
    %c0_7 = arith.constant 0 : index
    %c0_8 = arith.constant 0 : index
    %41 = vector.load %arg5[%c0_7, %c0_8] : memref<8x1xf32, #tpu.memory_space<vmem>>, vector<8x1xf32>
    %42 = arith.subf %41, %40 : vector<8x1xf32>
    %43 = math.exp %42 : vector<8x1xf32>
    %44 = vector.broadcast %40 : vector<8x1xf32> to vector<8x128xf32>
    %45 = arith.subf %11, %44 : vector<8x128xf32>
    %46 = math.exp %45 : vector<8x128xf32>
    %c0_9 = arith.constant 0 : index
    %c0_10 = arith.constant 0 : index
    %47 = vector.load %arg6[%c0_9, %c0_10] : memref<8x1xf32, #tpu.memory_space<vmem>>, vector<8x1xf32>
    %48 = arith.mulf %43, %47 : vector<8x1xf32>
    %cst_11 = arith.constant dense<0.000000e+00> : vector<8xf32>
    %49 = vector.multi_reduction <add>, %46, %cst_11 [1] : vector<8x128xf32> to vector<8xf32>
    %50 = vector.shape_cast %49 : vector<8xf32> to vector<8x1xf32>
    %51 = arith.addf %48, %50 : vector<8x1xf32>
    %c0_12 = arith.constant 0 : index
    %c0_13 = arith.constant 0 : index
    %52 = vector.load %arg6[%c0_12, %c0_13] : memref<8x1xf32, #tpu.memory_space<vmem>>, vector<8x1xf32>
    tpu.vector_store %arg6[%c0_12, %c0_13], %51 {strides = array<i32>} : memref<8x1xf32, #tpu.memory_space<vmem>>, vector<8x1xf32>,
    %c0_14 = arith.constant 0 : index
    %c0_15 = arith.constant 0 : index
    %53 = vector.load %arg7[%c0_14, %c0_15] : memref<8x1xf32, #tpu.memory_space<vmem>>, vector<8x1xf32>
    %54 = arith.mulf %43, %53 : vector<8x1xf32>
    %55 = arith.sitofp %36 : vector<8x128xi32> to vector<8x128xf32>
    %56 = arith.mulf %46, %55 : vector<8x128xf32>
    %cst_16 = arith.constant dense<0.000000e+00> : vector<8xf32>
    %57 = vector.multi_reduction <add>, %56, %cst_16 [1] : vector<8x128xf32> to vector<8xf32>
    %58 = vector.shape_cast %57 : vector<8xf32> to vector<8x1xf32>
    %59 = arith.addf %54, %58 : vector<8x1xf32>
    %c0_17 = arith.constant 0 : index
    %c0_18 = arith.constant 0 : index
    %60 = vector.load %arg7[%c0_17, %c0_18] : memref<8x1xf32, #tpu.memory_space<vmem>>, vector<8x1xf32>
    tpu.vector_store %arg7[%c0_17, %c0_18], %59 {strides = array<i32>} : memref<8x1xf32, #tpu.memory_space<vmem>>, vector<8x1xf32>,
    %c0_19 = arith.constant 0 : index
    %c0_20 = arith.constant 0 : index
    %61 = vector.load %arg5[%c0_19, %c0_20] : memref<8x1xf32, #tpu.memory_space<vmem>>, vector<8x1xf32>
    tpu.vector_store %arg5[%c0_19, %c0_20], %40 {strides = array<i32>} : memref<8x1xf32, #tpu.memory_space<vmem>>, vector<8x1xf32>,
    %c2_i32 = arith.constant 2 : i32
    %62 = arith.cmpi eq, %arg1, %c2_i32 : i32
    %63 = arith.extui %62 : i1 to i32
    %c0_i32_21 = arith.constant 0 : i32
    %64 = arith.cmpi ne, %63, %c0_i32_21 : i32
    scf.if %64 {
      %c0_22 = arith.constant 0 : index
      %c0_23 = arith.constant 0 : index
      %65 = vector.load %arg6[%c0_22, %c0_23] : memref<8x1xf32, #tpu.memory_space<vmem>>, vector<8x1xf32>
      %66 = math.log %65 : vector<8x1xf32>
      %c0_24 = arith.constant 0 : index
      %c0_25 = arith.constant 0 : index
      %67 = vector.load %arg7[%c0_24, %c0_25] : memref<8x1xf32, #tpu.memory_space<vmem>>, vector<8x1xf32>
      %68 = math.log %67 : vector<8x1xf32>
      %69 = arith.subf %66, %68 : vector<8x1xf32>
      %c8_i32 = arith.constant 8 : i32
      %70 = arith.muli %arg0, %c8_i32 : i32
      %71 = tpu.iota {dimensions = array<i32: 0>} : vector<8x1xi32>
      %72 = vector.broadcast %70 : i32 to vector<8x1xi32>
      %73 = arith.addi %72, %71 : vector<8x1xi32>
      %c20_i32 = arith.constant 20 : i32
      %74 = vector.broadcast %c20_i32 : i32 to vector<8x1xi32>
      %75 = arith.cmpi slt, %73, %74 : vector<8x1xi32>
      %cst_26 = arith.constant 0.000000e+00 : f32
      %76 = vector.broadcast %cst_26 : f32 to vector<8x1xf32>
      %77 = arith.select %75, %69, %76 : vector<8x1xi1>, vector<8x1xf32>
      %78 = vector.shape_cast %77 : vector<8x1xf32> to vector<1x8x1xf32>
      %cst_27 = arith.constant dense<0.000000e+00> : vector<1xf32>
      %79 = vector.multi_reduction <add>, %78, %cst_27 [1, 2] : vector<1x8x1xf32> to vector<1xf32>
      %80 = vector.shape_cast %79 : vector<1xf32> to vector<1x1x1xf32>
      %81 = vector.extract %80[0, 0, 0] : f32 from vector<1x1x1xf32>
      %82 = tpu.iota {dimensions = array<i32: 0>} : vector<8x128xi32>
      %83 = tpu.iota {dimensions = array<i32: 1>} : vector<8x128xi32>
      %c0_i32_28 = arith.constant 0 : i32
      %84 = vector.broadcast %c0_i32_28 : i32 to vector<8x128xi32>
      %85 = arith.cmpi eq, %82, %84 : vector<8x128xi32>
      %c0_i32_29 = arith.constant 0 : i32
      %86 = vector.broadcast %c0_i32_29 : i32 to vector<8x128xi32>
      %87 = arith.cmpi eq, %83, %86 : vector<8x128xi32>
      %88 = arith.andi %85, %87 : vector<8x128xi1>
      %cst_30 = arith.constant 0.000000e+00 : f32
      %89 = vector.broadcast %81 : f32 to vector<8x128xf32>
      %90 = vector.broadcast %cst_30 : f32 to vector<8x128xf32>
      %91 = arith.select %88, %89, %90 : vector<8x128xi1>, vector<8x128xf32>
      %c0_31 = arith.constant 0 : index
      %c0_32 = arith.constant 0 : index
      %92 = vector.load %arg4[%c0_31, %c0_32] : memref<8x128xf32, #tpu.memory_space<vmem>>, vector<8x128xf32>
      tpu.vector_store %arg4[%c0_31, %c0_32], %91 {strides = array<i32>} : memref<8x128xf32, #tpu.memory_space<vmem>>, vector<8x128xf32>,
    } else {
    }
    return
  }
  func.func @transform_0(%arg0: i32, %arg1: i32) -> (i32, i32) {
    %c0_i32 = arith.constant 0 : i32
    return %arg0, %arg1 : i32, i32
  }
  func.func @transform_1(%arg0: i32, %arg1: i32) -> (i32, i32) {
    %c0_i32 = arith.constant 0 : i32
    %c0_i32_0 = arith.constant 0 : i32
    return %arg0, %c0_i32 : i32, i32
  }
  func.func @transform_2(%arg0: i32, %arg1: i32) -> (i32, i32) {
    %c0_i32 = arith.constant 0 : i32
    %c0_i32_0 = arith.constant 0 : i32
    return %arg0, %c0_i32 : i32, i32
  }
}

</mosaic_0001>

<llo_original>
// kernel: tpu_custom_call.1
$region0: #{tpu_custom_call.1}
  #allocation0 [shape = 'u32[]', space=smem, size = 0x4, offset = 0x4, fixed_abs, tag = 'smem constant byte address 0x4 - core index']
  #allocation1 [shape = 'u32[144,128]{1,0:T(1,128)}', space=vmem, size = 0x12000, scoped, tag = 'internal scratch']
  #allocation2 [shape = 'f32[8,1]{1,0:T(8,128)}', space=vmem, size = 0x1000, scoped, tag = 'scratch operand']
  #allocation3 [shape = 'f32[8,1]{1,0:T(8,128)}', space=vmem, size = 0x1000, scoped, tag = 'scratch operand']
  #allocation4 [shape = 'f32[8,1]{1,0:T(8,128)}', space=vmem, size = 0x1000, scoped, tag = 'scratch operand']
  %s0 = inlined_call_operand.hbm [shape: f32[20,320], index: 0, kind: input, shape index: {}]
  %s1 = inlined_call_operand.vmem [shape: s32[20,5], index: 1, kind: input, shape index: {}]
  %s2 = inlined_call_operand.hbm [shape: f32[24,128], index: 2, kind: output, shape index: {}]
  %s3 = sld [smem:[#allocation0]]
  $region53: #{tpu_custom_call.1} parent=0
    _
  %s5 = ssub.s32 1, %s3
  %s6 = scalar_select 0, %s5, %s3
  $region1: #{tpu_custom_call.1} parent=0
    #allocation5 [shape = 'u8[8192]{0}', space=vmem, size = 0x2000, scoped, tag = 'input window, operand 0']
    #allocation6 [shape = 's32[2]{0}', space=sflag, size = 0x8, scoped, tag = 'scoped memory for tpu_custom_call.1']
    #allocation7 [shape = 's32[2]{0}', space=sflag, size = 0x8, scoped, tag = 'scoped memory for tpu_custom_call.1']
    #allocation8 [shape = 'u8[8192]{0}', space=vmem, size = 0x2000, scoped, tag = 'output window, operand 0']
    %7 = vsyncpa [#allocation6], 0
    %s8 = scalar_lea.sflag [#allocation6], 1
    %9 = vsyncpa %s8, 0
    %10 = vsyncpa [#allocation7], 0
    %s11 = scalar_lea.sflag [#allocation7], 1
    %12 = vsyncpa %s11, 0
    loop: start=0, step=1, limit=11
    $region2: #{tpu_custom_call.1} parent=1 // loop_pre_header
      _
    $region3: #{tpu_custom_call.1} parent=1 // loop_header
      %s14 = sphi 0, %s18
      %p15 = scmp.ge.s32.totalorder %s14, 11
      %s21 = sphi 0, %s33
      %s22 = sphi 0, %s29
      %s23 = sphi 0, %s21
      %s24 = sphi 0, %s22
      %s25 = sphi 0, %s23
      %s26 = sphi 0, %s24
      %s38 = sphi 0, %s40
      %s41 = sphi 0, %s38
      %s42 = sphi 0, %s41
      %s58 = sphi 0, %s42
      %s64 = sphi 0, %s66
      %s67 = sphi 0, %s64
      %s68 = sphi 0, %s67
      %s84 = sphi 0, %s68
      %s90 = sphi 0, %s92
      %s93 = sphi 0, %s90
      %s94 = sphi 0, %s93
      %s110 = sphi 0, %s94
    $region4: #{tpu_custom_call.1} parent=1 // loop_header_branch
      %17 = sbr.rel (%p15) target = $region8
    $region5: #{tpu_custom_call.1} parent=1 // loop_body
      %s19 = ssub.s32 %s14, 1
      %s20 = ssub.s32 %s14, 2
      %s27 = sadd.s32 1, %s22
      %p28 = scmp.ge.s32.totalorder %s27, 3
      %s29 = scalar_select %p28, 0, %s27
      %s30 = sadd.s32 1, %s21
      %s31 = scalar_select %p28, %s30, %s21
      %p32 = scmp.ge.s32.totalorder %s31, 3
      %s33 = scalar_select %p32, 0, %s31
      %s34 = ssub.s32 %s21, %s33
      %s35 = ssub.s32 %s22, %s29
      %s36 = sor.u32 %s34, %s35
      %p37 = scmp.eq.s32.totalorder %s36, 0
      %s39 = sadd.s32 %s38, 1
      %s40 = scalar_select %p37, %s38, %s39
      %p43 = pneg %p37
      %p44 = scmp.eq.s32.totalorder %s14, 8
      %p45 = por %p43, %p44
      %p46 = scmp.ne.s32.totalorder %s38, %s41
      %p47 = scmp.eq.s32.totalorder %s14, 0
      %p48 = por %p46, %p47
      %p49 = scmp.ne.s32.totalorder %s38, %s41
      %p50 = scmp.eq.s32.totalorder %s19, 8
      %p51 = por %p49, %p50
      %p52 = scmp.ne.s32.totalorder %s41, %s42
      %p53 = scmp.eq.s32.totalorder %s19, 0
      %p54 = por %p52, %p53
      %p55 = scmp.ne.s32.totalorder %s41, %s42
      %p56 = scmp.eq.s32.totalorder %s20, 8
      %p57 = por %p55, %p56
      %p59 = scmp.ne.s32.totalorder %s42, %s58
      %p60 = scmp.eq.s32.totalorder %s20, 0
      %p61 = por %p59, %p60
      %s62 = ssub.s32 %s21, %s33
      %p63 = scmp.eq.s32.totalorder %s62, 0
      %s65 = sadd.s32 %s64, 1
      %s66 = scalar_select %p63, %s64, %s65
      %p69 = pneg %p63
      %p70 = scmp.eq.s32.totalorder %s14, 8
      %p71 = por %p69, %p70
      %p72 = scmp.ne.s32.totalorder %s64, %s67
      %p73 = scmp.eq.s32.totalorder %s14, 0
      %p74 = por %p72, %p73
      %p75 = scmp.ne.s32.totalorder %s64, %s67
      %p76 = scmp.eq.s32.totalorder %s19, 8
      %p77 = por %p75, %p76
      %p78 = scmp.ne.s32.totalorder %s67, %s68
      %p79 = scmp.eq.s32.totalorder %s19, 0
      %p80 = por %p78, %p79
      %p81 = scmp.ne.s32.totalorder %s67, %s68
      %p82 = scmp.eq.s32.totalorder %s20, 8
      %p83 = por %p81, %p82
      %p85 = scmp.ne.s32.totalorder %s68, %s84
      %p86 = scmp.eq.s32.totalorder %s20, 0
      %p87 = por %p85, %p86
      %s88 = ssub.s32 %s21, %s33
      %p89 = scmp.eq.s32.totalorder %s88, 0
      %s91 = sadd.s32 %s90, 1
      %s92 = scalar_select %p89, %s90, %s91
      %p95 = pneg %p89
      %p96 = scmp.eq.s32.totalorder %s14, 8
      %p97 = por %p95, %p96
      %p98 = scmp.ne.s32.totalorder %s90, %s93
      %p99 = scmp.eq.s32.totalorder %s14, 0
      %p100 = por %p98, %p99
      %p101 = scmp.ne.s32.totalorder %s90, %s93
      %p102 = scmp.eq.s32.totalorder %s19, 8
      %p103 = por %p101, %p102
      %p104 = scmp.ne.s32.totalorder %s93, %s94
      %p105 = scmp.eq.s32.totalorder %s19, 0
      %p106 = por %p104, %p105
      %p107 = scmp.ne.s32.totalorder %s93, %s94
      %p108 = scmp.eq.s32.totalorder %s20, 8
      %p109 = por %p107, %p108
      %p111 = scmp.ne.s32.totalorder %s94, %s110
      %p112 = scmp.eq.s32.totalorder %s20, 0
      %p113 = por %p111, %p112
      %p114 = scmp.le.s32.totalorder 1, %s14
      %p115 = scmp.lt.s32.totalorder %s14, 10
      %p116 = pnand %p114, %p115
      %p117 = pneg %p116
      // Predicated region
      $region9: #{tpu_custom_call.1} parent=5 // pred_check
        _
      $region10: #{tpu_custom_call.1} parent=5 // pred_check_branch
        %119 = sbr.rel (%p116) target = $region12
      $region11: #{tpu_custom_call.1} parent=5 // pred_region
        %s120 = ssub.s32 %s14, 1
      $region12: #{tpu_custom_call.1} parent=5 // pred_fallthru
        _
      %p121 = scmp.lt.s32.totalorder %s14, 9
      // Predicated region
      $region13: #{tpu_custom_call.1} parent=5 // pred_check
        %p122 = pneg %p121
      $region14: #{tpu_custom_call.1} parent=5 // pred_check_branch
        %124 = sbr.rel (%p122) target = $region16
      $region15: #{tpu_custom_call.1} parent=5 // pred_region
        // Predicated region
        $region17: #{tpu_custom_call.1} parent=15 // pred_check
          %p125 = pneg %p48
        $region18: #{tpu_custom_call.1} parent=15 // pred_check_branch
          %127 = sbr.rel (%p125) target = $region20
        $region19: #{tpu_custom_call.1} parent=15 // pred_region
          %s128 = sand.u32 %s38, 1
          %s129 = scalar_lea.sflag [#allocation6], %s128
          %s130 = sand.u32 %s38, 1
          %s131 = smul.addr %s130, 8
          %s132 = scalar_lea.vmem [#allocation5], %s131
          %s134 = ssub.s32 128, 128
          %135 = vsyncadd %s129, %s134
          %s136 = smul.addr %s21, 3
          %s137 = sadd.s32 %s22, %s136
          %s138 = smul.addr %s137, 128
          %s139 = scalar_lea.hbm %s0, %s138
          %s141 = sshll.u32 %s132, 4
          %s142 = int_to_ptr.vmem [resolvable:$true] %s141
          %144 = dma.hbm_to_vmem [thread:$0]  %s139, 128, %s142, %s129
        $region20: #{tpu_custom_call.1} parent=15 // pred_fallthru
          _
        // Predicated region
        $region21: #{tpu_custom_call.1} parent=15 // pred_check
          %p145 = pneg %p74
        $region22: #{tpu_custom_call.1} parent=15 // pred_check_branch
          %147 = sbr.rel (%p145) target = $region24
        $region23: #{tpu_custom_call.1} parent=15 // pred_region
          %p148 = scmp.lt.s32.totalorder %s21, 2
          %s149 = scalar_select %p148, %s21, 2
          %s150 = smul.addr %s149, 8
          %s151 = scalar_lea.vmem %s1, %s150
        $region24: #{tpu_custom_call.1} parent=15 // pred_fallthru
          _
      $region16: #{tpu_custom_call.1} parent=5 // pred_fallthru
        _
      %p152 = scmp.le.s32.totalorder 1, %s14
      %p153 = scmp.lt.s32.totalorder %s14, 10
      %p154 = pnand %p152, %p153
      %p155 = pneg %p154
      // Predicated region
      $region25: #{tpu_custom_call.1} parent=5 // pred_check
        _
      $region26: #{tpu_custom_call.1} parent=5 // pred_check_branch
        %157 = sbr.rel (%p154) target = $region28
      $region27: #{tpu_custom_call.1} parent=5 // pred_region
        %s158 = ssub.s32 %s14, 1
        %s159 = sand.u32 %s41, 1
        %s160 = scalar_lea.sflag [#allocation6], %s159
        %s161 = sand.u32 %s41, 1
        %s162 = smul.addr %s161, 8
        %s163 = scalar_lea.vmem [#allocation5], %s162
        // Predicated region
        $region29: #{tpu_custom_call.1} parent=27 // pred_check
          %p164 = pneg %p54
        $region30: #{tpu_custom_call.1} parent=27 // pred_check_branch
          %166 = sbr.rel (%p164) target = $region32
        $region31: #{tpu_custom_call.1} parent=27 // pred_region
          %167 = dma.done %s160, 128
        $region32: #{tpu_custom_call.1} parent=27 // pred_fallthru
          _
        %s168 = sand.u32 %s41, 1
        %s169 = scalar_lea.sflag [#allocation6], %s168
        %s170 = sand.u32 %s41, 1
        %s171 = smul.addr %s170, 8
        %s172 = scalar_lea.vmem [#allocation5], %s171
        %p173 = pneg %p54
        %p174 = pneg %p51
        %p175 = scmp.lt.s32.totalorder %s23, 2
        %s176 = scalar_select %p175, %s23, 2
        %s177 = smul.addr %s176, 8
        %s178 = scalar_lea.vmem %s1, %s177
        %p179 = pneg %p80
        %p180 = pneg %p77
        %p181 = pneg %p106
        %p182 = pneg %p103
        %s183 = sand.u32 %s93, 1
        %s184 = scalar_lea.sflag [#allocation7], %s183
        %s185 = sand.u32 %s93, 1
        %s186 = smul.addr %s185, 8
        %s187 = scalar_lea.vmem [#allocation8], %s186
        %p188 = scmp.lt.s32.totalorder %s23, 2
        %s189 = scalar_select %p188, %s23, 2
        %s190 = smul.addr %s189, 8
        %s191 = scalar_lea.vmem %s1, %s190
        %p192 = scmp.eq.s32.totalorder %s24, 0
        // Predicated region
        $region33: #{tpu_custom_call.1} parent=27 // pred_check
          %p193 = pneg %p192
        $region34: #{tpu_custom_call.1} parent=27 // pred_check_branch
          %195 = sbr.rel (%p193) target = $region36
        $region35: #{tpu_custom_call.1} parent=27 // pred_region
          %vm196 = vcmask 7168
          %197 = vst.msk [vmem:[#allocation2] sm:$0xff] %vm196, -inf
          %198 = vst.msk [vmem:[#allocation3] sm:$0xff] %vm196, 0.0
          %199 = vst.msk [vmem:[#allocation4] sm:$0xff] %vm196, 0.0
        $region36: #{tpu_custom_call.1} parent=27 // pred_fallthru
          _
        %v200 = vld [vmem:[%s163] sm:$0xff]
        %s201 = smul.u32 %s24, 128
        %v202 = vlaneseq
        %v203 = vand.u32 %v202, 127
        %v204 = vstv %s201
        %v205 = vadd.s32 %v204, %v203
        %vm206 = vcmp.lt.s32.totalorder %v205, 320
        %v207 = vsel %vm206, %v200, -inf
        %v208 = vld [vmem:[%s191] sm:$0xff]
        %209 = vset.pattern.permute.xlu0 0
        %210 = vperm.xlu0 %209, %v208
        %v211 = vpop.permute.xlu0 %210
        %vm212 = vcmp.eq.s32.totalorder %v205, %v211
        %v213 = vsel %vm212, 1, 0
        %214 = vset.pattern.permute.xlu0 1
        %215 = vperm.xlu0 %214, %v208
        %v216 = vpop.permute.xlu0 %215
        %vm217 = vcmp.eq.s32.totalorder %v205, %v216
        %v218 = vsel %vm217, 1, 0
        %v219 = vadd.s32 %v213, %v218
        %220 = vset.pattern.permute.xlu0 2
        %221 = vperm.xlu0 %220, %v208
        %v222 = vpop.permute.xlu0 %221
        %vm223 = vcmp.eq.s32.totalorder %v205, %v222
        %v224 = vsel %vm223, 1, 0
        %v225 = vadd.s32 %v219, %v224
        %226 = vset.pattern.permute.xlu0 3
        %227 = vperm.xlu0 %226, %v208
        %v228 = vpop.permute.xlu0 %227
        %vm229 = vcmp.eq.s32.totalorder %v205, %v228
        %v230 = vsel %vm229, 1, 0
        %v231 = vadd.s32 %v225, %v230
        %232 = vset.pattern.permute.xlu0 4
        %233 = vperm.xlu0 %232, %v208
        %v234 = vpop.permute.xlu0 %233
        %vm235 = vcmp.eq.s32.totalorder %v205, %v234
        %v236 = vsel %vm235, 1, 0
        %v237 = vadd.s32 %v231, %v236
        %238 = vmax.xlane.f32.xlu0 %v207
        %v239 = vpop.xlane.xlu0 %238
        %v240 = vld [vmem:[#allocation2] sm:$0xff]
        %v241 = vmax.f32 %v240, %v239
        %v242 = vsub.f32 %v240, %v241
        %v243 = vmul.f32 %v242, 1.442695
        %v244 = vpow.pop %v243
        %246 = vset.pattern.permute.xlu0 0
        %247 = vperm.xlu0 %246, %v241
        %v248 = vpop.permute.xlu0 %247
        %v250 = vsub.f32 %v207, %v248
        %v251 = vmul.f32 %v250, 1.442695
        %v252 = vpow.pop %v251
        %v253 = vld [vmem:[#allocation3] sm:$0xff]
        %v254 = vmul.f32 %v244, %v253
        %255 = vadd.xlane.f32.xlu0 %v252
        %v256 = vpop.xlane.xlu0 %255
        %v257 = vadd.f32 %v254, %v256
        %vm258 = vcmask 7168
        %259 = vst.msk [vmem:[#allocation3] sm:$0xff] %vm258, %v257
        %v260 = vld [vmem:[#allocation4] sm:$0xff]
        %v261 = vmul.f32 %v244, %v260
        %v262 = vcvt.s32.f32 %v237
        %v263 = vmul.f32 %v252, %v262
        %264 = vadd.xlane.f32.xlu0 %v263
        %v265 = vpop.xlane.xlu0 %264
        %v266 = vadd.f32 %v261, %v265
        %267 = vst.msk [vmem:[#allocation4] sm:$0xff] %vm258, %v266
        %268 = vst.msk [vmem:[#allocation2] sm:$0xff] %vm258, %v241
        %p269 = scmp.eq.s32.totalorder %s24, 2
        // Predicated region
        $region37: #{tpu_custom_call.1} parent=27 // pred_check
          %p270 = pneg %p269
        $region38: #{tpu_custom_call.1} parent=27 // pred_check_branch
          %272 = sbr.rel (%p270) target = $region40
        $region39: #{tpu_custom_call.1} parent=27 // pred_region
          %v273 = vld [vmem:[#allocation3] sm:$0xff]
          %v274 = vlog2.pop %v273
          %v275 = vmul.f32 %v274, 0.6931472
          %v276 = vld [vmem:[#allocation4] sm:$0xff]
          %v277 = vlog2.pop %v276
          %v278 = vmul.f32 %v277, 0.6931472
          %v279 = vsub.f32 %v275, %v278
          %s280 = smul.u32 %s23, 8
          %v281 = vlaneseq
          %v282 = vshrl.u32 %v281, 7
          %v283 = vstv %s280
          %v284 = vadd.s32 %v283, %v282
          %vm285 = vcmp.lt.s32.totalorder %v284, 20
          %v286 = vsel %vm285, %v279, 0.0
          %v287 = vsel %vm258, %v286, 0.0
          %288 = vadd.xlane.f32.xlu0 %v287
          %v289 = vpop.xlane.xlu0 %288
          %v290 = vrot.slane %v289, 4
          %v291 = vadd.f32 %v289, %v290
          %v292 = vrot.slane %v291, 2
          %v293 = vadd.f32 %v291, %v292
          %v294 = vrot.slane %v293, 1
          %v295 = vadd.f32 %v293, %v294
          %s296 = vtos %v295
          %vm297 = vcmp.eq.s32.totalorder %v282, 0
          %vm298 = vcmp.eq.s32.totalorder %v203, 0
          %vm299 = vmand %vm297, %vm298
          %v300 = vstv %s296
          %v301 = vsel %vm299, %v300, 0.0
          %302 = vst [vmem:[%s187] sm:$0xff] %v301
        $region40: #{tpu_custom_call.1} parent=27 // pred_fallthru
          _
        %s303 = sand.u32 %s93, 1
        %s304 = scalar_lea.sflag [#allocation7], %s303
        %s305 = sand.u32 %s93, 1
        %s306 = smul.addr %s305, 8
        %s307 = scalar_lea.vmem [#allocation8], %s306
        // Predicated region
        $region41: #{tpu_custom_call.1} parent=27 // pred_check
          %p308 = pneg %p103
        $region42: #{tpu_custom_call.1} parent=27 // pred_check_branch
          %310 = sbr.rel (%p308) target = $region44
        $region43: #{tpu_custom_call.1} parent=27 // pred_region
          %s312 = ssub.s32 128, 128
          %313 = vsyncadd %s304, %s312
          %s314 = smul.addr %s23, 128
          %s315 = scalar_lea.hbm %s2, %s314
          %s317 = sshll.u32 %s307, 4
          %s318 = int_to_ptr.vmem [resolvable:$true] %s317
          %320 = dma.vmem_to_hbm [thread:$0]  %s318, 128, %s315, %s304
        $region44: #{tpu_custom_call.1} parent=27 // pred_fallthru
          _
      $region28: #{tpu_custom_call.1} parent=5 // pred_fallthru
        _
      %p321 = scmp.le.s32.totalorder 2, %s14
      // Predicated region
      $region45: #{tpu_custom_call.1} parent=5 // pred_check
        %p322 = pneg %p321
      $region46: #{tpu_custom_call.1} parent=5 // pred_check_branch
        %324 = sbr.rel (%p322) target = $region48
      $region47: #{tpu_custom_call.1} parent=5 // pred_region
        %s325 = ssub.s32 %s14, 2
        // Predicated region
        $region49: #{tpu_custom_call.1} parent=47 // pred_check
          %p326 = pneg %p109
        $region50: #{tpu_custom_call.1} parent=47 // pred_check_branch
          %328 = sbr.rel (%p326) target = $region52
        $region51: #{tpu_custom_call.1} parent=47 // pred_region
          %s329 = sand.u32 %s94, 1
          %s330 = scalar_lea.sflag [#allocation7], %s329
          %s331 = sand.u32 %s94, 1
          %s332 = smul.addr %s331, 8
          %s333 = scalar_lea.vmem [#allocation8], %s332
          %334 = dma.done %s330, 128
        $region52: #{tpu_custom_call.1} parent=47 // pred_fallthru
          _
      $region48: #{tpu_custom_call.1} parent=5 // pred_fallthru
        _
    $region6: #{tpu_custom_call.1} parent=1 // loop_footer
      %s18 = sadd.s32 1, %s14
    $region7: #{tpu_custom_call.1} parent=1 // loop_footer_branch
      %13 = sbr.rel target = $region3
    $region8: #{tpu_custom_call.1} parent=1 // loop_exit
      _
    %335 = vsyncpa [#allocation6], 1
    %s336 = scalar_lea.sflag [#allocation6], 1
    %337 = vsyncpa %s336, 1
    %338 = vsyncpa [#allocation7], 1
    %s339 = scalar_lea.sflag [#allocation7], 1
    %340 = vsyncpa %s339, 1

</llo_original>
